<compile_context>
chip_gen: v5e
topology: v5e:2x2
jax: 0.10.0
libtpu: 0.0.40
codegen_flags: <defaults>
</compile_context>

<pallas_src>
import functools

import jax
import jax.numpy as jnp
from jax.experimental import pallas as pl
from jax.experimental.pallas import tpu as pltpu


def _round_up(n, m):
    return ((n + m - 1) // m) * m


def _cdiv(n, m):
    return (n + m - 1) // m


def _elu(x):
    # ELU with alpha=1.0 (torch.nn.functional.elu default).  The exp argument is
    # clamped to <= 0 so the unselected branch of the where never overflows.
    return jnp.where(x > 0, x, jnp.exp(jnp.minimum(x, 0.0)) - 1.0)


def qnet_kernel(x_ref, w1_ref, b1_ref, w2_ref, b2_ref, w3_ref, b3_ref, o_ref):
    x = x_ref[...]  # (bb, f_in) float32

    # fc1 + ELU   (bf16 MXU operands, f32 accumulation, f32 elementwise)
    h = jnp.dot(x.astype(jnp.bfloat16), w1_ref[...],
                preferred_element_type=jnp.float32) + b1_ref[...]
    h = _elu(h)

    # fc2 + ELU
    h = jnp.dot(h.astype(jnp.bfloat16), w2_ref[...],
                preferred_element_type=jnp.float32) + b2_ref[...]
    h = _elu(h)

    # fc3 — real output width.  Masked vst into VMEM is fine (store slot has
    # slack); the HBM write is exactly (valid_rows, out) — no zero padding.
    o_ref[...] = jnp.dot(h.astype(jnp.bfloat16), w3_ref[...],
                         preferred_element_type=jnp.float32) + b3_ref[...]


@functools.partial(jax.jit, static_argnames=("block_b",))
def qnet_forward(x, packed_params, *, block_b=4096):
    """Fused QNet forward.  x: (B, F_in) float32 -> (B, out) float32.

    packed_params: output of pack_qnet_params() (bf16 weights, f32 biases).
    """
    assert block_b % 8 == 0, "block_b must be a multiple of 8 sublanes"
    w1, b1, w2, b2, w3, b3 = packed_params
    B, f_in = x.shape
    out = w3.shape[1]

    # Batch tiling.  No padding / slicing: ragged last tiles are handled by
    # Pallas partial-block masking (OOB rows are never written to HBM).
    if B <= block_b:
        bb = B  # single block == full batch dim -> always a legal block shape
        if B >= 1024:
            # Split into two ~equal 8-aligned tiles so both TensorCores on a
            # megacore part (v7x) get work; zero pad waste, one extra (cheap)
            # grid step on single-TC v5e/v6e.
            bb = _round_up(_cdiv(B, 2), 8)
    else:
        bb = block_b
    grid = (_cdiv(B, bb),)

    full = lambda a: pl.BlockSpec(a.shape, lambda i: (0, 0))  # resident block

    y = pl.pallas_call(
        qnet_kernel,
        out_shape=jax.ShapeDtypeStruct((B, out), jnp.float32),
        grid_spec=pltpu.PrefetchScalarGridSpec(
            num_scalar_prefetch=0,
            grid=grid,
            in_specs=[
                pl.BlockSpec((bb, f_in), lambda i: (i, 0)),   # x tile
                full(w1), full(b1),
                full(w2), full(b2),
                full(w3), full(b3),
            ],
            out_specs=pl.BlockSpec((bb, out), lambda i: (i, 0)),
        ),
        compiler_params=pltpu.CompilerParams(
            dimension_semantics=("parallel",)),
    )(x, w1, b1, w2, b2, w3, b3)

    return y


def pack_qnet_params(params):
    """One-time param packing (outside jit): bf16 weights, f32 biases."""
    w1, b1, w2, b2, w3, b3 = params
    return (w1.astype(jnp.bfloat16), b1,
            w2.astype(jnp.bfloat16), b2,
            w3.astype(jnp.bfloat16), b3)


def init_qnet_params(key, input_size, output_size, hidden_size):
    """Deterministic init mimicking nn.Linear's U(-1/sqrt(fan_in), 1/sqrt(fan_in))."""
    def linear(key, fan_in, fan_out):
        kw, kb = jax.random.split(key)
        bound = 1.0 / jnp.sqrt(fan_in)
        w = jax.random.uniform(kw, (fan_in, fan_out), jnp.float32, -bound, bound)
        b = jax.random.uniform(kb, (1, fan_out), jnp.float32, -bound, bound)
        return w, b

    k1, k2, k3 = jax.random.split(key, 3)
    w1, b1 = linear(k1, input_size, hidden_size)
    w2, b2 = linear(k2, hidden_size, hidden_size)
    w3, b3 = linear(k3, hidden_size, output_size)
    return (w1, b1, w2, b2, w3, b3)


def qnet_reference(x, params):
    """Pure-JAX f32 reference for correctness checking."""
    w1, b1, w2, b2, w3, b3 = params
    h = jax.nn.elu(x @ w1 + b1)
    h = jax.nn.elu(h @ w2 + b2)
    return h @ w3 + b3


if __name__ == "__main__":
    # QNet(input_size=(16,), output_size=4, hidden_size=32)
    INPUT_SIZE = 16
    OUTPUT_SIZE = 4
    HIDDEN_SIZE = 32

    key = jax.random.PRNGKey(0)
    kx1, kx2, kx3, kp = jax.random.split(key, 4)
    params = init_qnet_params(kp, INPUT_SIZE, OUTPUT_SIZE, HIDDEN_SIZE)
    packed = pack_qnet_params(params)   # one-time bf16 weight cast, outside jit

    # 1) Small aligned batch (single grid step, real-width output store).
    x1 = jax.random.normal(kx1, (16, INPUT_SIZE), jnp.float32)
    y1 = jax.block_until_ready(qnet_forward(x1, packed))
    assert y1.shape == (16, OUTPUT_SIZE)
    assert jnp.allclose(y1, qnet_reference(x1, params), atol=5e-2, rtol=5e-2), \
        "mismatch vs reference (aligned)"

    # 2) Ragged batch with a small tile: 4 grid steps, last block partial
    #    (only 8 valid rows) — exercises in-pipeline boundary masking.
    x2 = jax.random.normal(kx2, (200, INPUT_SIZE), jnp.float32)
    y2 = jax.block_until_ready(qnet_forward(x2, packed, block_b=64))
    assert y2.shape == (200, OUTPUT_SIZE)
    assert jnp.allclose(y2, qnet_reference(x2, params), atol=5e-2, rtol=5e-2), \
        "mismatch vs reference (ragged)"

    # 3) Odd larger batch: exercises the balanced 2-way split (bb=552, 2 steps,
    #    second block partial) with no padding or post-slice.
    x3 = jax.random.normal(kx3, (1100, INPUT_SIZE), jnp.float32)
    y3 = jax.block_until_ready(qnet_forward(x3, packed))
    assert y3.shape == (1100, OUTPUT_SIZE)
    assert jnp.allclose(y3, qnet_reference(x3, params), atol=5e-2, rtol=5e-2), \
        "mismatch vs reference (split)"

    print("KERNEL_OK")
</pallas_src>

<mosaic_0001>
module attributes {stable_mosaic.version = 11 : i64} {
  func.func @qnet_kernel(%arg0: i32, %arg1: memref<16x16xf32, #tpu.memory_space<vmem>>, %arg2: memref<16x32xbf16, #tpu.memory_space<vmem>>, %arg3: memref<1x32xf32, #tpu.memory_space<vmem>>, %arg4: memref<32x32xbf16, #tpu.memory_space<vmem>>, %arg5: memref<1x32xf32, #tpu.memory_space<vmem>>, %arg6: memref<32x4xbf16, #tpu.memory_space<vmem>>, %arg7: memref<1x4xf32, #tpu.memory_space<vmem>>, %arg8: memref<16x4xf32, #tpu.memory_space<vmem>>) attributes {dimension_semantics = [#tpu.dimension_semantics<parallel>], iteration_bounds = array<i64: 1>, scalar_prefetch = 0 : i64, scratch_operands = 0 : i64, tpu.core_type = #tpu.core_type<tc>, window_params = [{transform_indices = @transform_0, window_bounds = array<i64: 16, 16>}, {pipeline_mode = #tpu.pipeline_mode<synchronous>, transform_indices = @transform_1, window_bounds = array<i64: 16, 32>}, {pipeline_mode = #tpu.pipeline_mode<synchronous>, transform_indices = @transform_2, window_bounds = array<i64: 1, 32>}, {pipeline_mode = #tpu.pipeline_mode<synchronous>, transform_indices = @transform_3, window_bounds = array<i64: 32, 32>}, {pipeline_mode = #tpu.pipeline_mode<synchronous>, transform_indices = @transform_4, window_bounds = array<i64: 1, 32>}, {pipeline_mode = #tpu.pipeline_mode<synchronous>, transform_indices = @transform_5, window_bounds = array<i64: 32, 4>}, {pipeline_mode = #tpu.pipeline_mode<synchronous>, transform_indices = @transform_6, window_bounds = array<i64: 1, 4>}, {transform_indices = @transform_7, window_bounds = array<i64: 16, 4>}]} {
    %c0 = arith.constant 0 : index
    %c0_0 = arith.constant 0 : index
    %0 = vector.load %arg1[%c0, %c0_0] : memref<16x16xf32, #tpu.memory_space<vmem>>, vector<16x16xf32>
    %1 = arith.truncf %0 : vector<16x16xf32> to vector<16x16xbf16>
    %c0_1 = arith.constant 0 : index
    %c0_2 = arith.constant 0 : index
    %2 = vector.load %arg2[%c0_1, %c0_2] : memref<16x32xbf16, #tpu.memory_space<vmem>>, vector<16x32xbf16>
    %cst = arith.constant dense<0.000000e+00> : vector<16x32xf32>
    %3 = tpu.matmul %1, %2, %cst {dimension_numbers = #tpu.dot_dimension_numbers<[1], [0], [0], [1], [0, 0, 1, 1], [], []>} : vector<16x16xbf16>, vector<16x32xbf16>, vector<16x32xf32> -> vector<16x32xf32>
    %c0_3 = arith.constant 0 : index
    %c0_4 = arith.constant 0 : index
    %4 = vector.load %arg3[%c0_3, %c0_4] : memref<1x32xf32, #tpu.memory_space<vmem>>, vector<1x32xf32>
    %5 = vector.broadcast %4 : vector<1x32xf32> to vector<16x32xf32>
    %6 = arith.addf %3, %5 : vector<16x32xf32>
    %cst_5 = arith.constant 0.000000e+00 : f32
    %7 = vector.broadcast %cst_5 : f32 to vector<16x32xf32>
    %8 = arith.cmpf ogt, %6, %7 : vector<16x32xf32>
    %cst_6 = arith.constant 0.000000e+00 : f32
    %9 = vector.broadcast %cst_6 : f32 to vector<16x32xf32>
    %10 = arith.minimumf %6, %9 : vector<16x32xf32>
    %11 = math.exp %10 : vector<16x32xf32>
    %cst_7 = arith.constant 1.000000e+00 : f32
    %12 = vector.broadcast %cst_7 : f32 to vector<16x32xf32>
    %13 = arith.subf %11, %12 : vector<16x32xf32>
    %14 = arith.select %8, %6, %13 : vector<16x32xi1>, vector<16x32xf32>
    %15 = arith.truncf %14 : vector<16x32xf32> to vector<16x32xbf16>
    %c0_8 = arith.constant 0 : index
    %c0_9 = arith.constant 0 : index
    %16 = vector.load %arg4[%c0_8, %c0_9] : memref<32x32xbf16, #tpu.memory_space<vmem>>, vector<32x32xbf16>
    %cst_10 = arith.constant dense<0.000000e+00> : vector<16x32xf32>
    %17 = tpu.matmul %15, %16, %cst_10 {dimension_numbers = #tpu.dot_dimension_numbers<[1], [0], [0], [1], [0, 0, 1, 1], [], []>} : vector<16x32xbf16>, vector<32x32xbf16>, vector<16x32xf32> -> vector<16x32xf32>
    %c0_11 = arith.constant 0 : index
    %c0_12 = arith.constant 0 : index
    %18 = vector.load %arg5[%c0_11, %c0_12] : memref<1x32xf32, #tpu.memory_space<vmem>>, vector<1x32xf32>
    %19 = vector.broadcast %18 : vector<1x32xf32> to vector<16x32xf32>
    %20 = arith.addf %17, %19 : vector<16x32xf32>
    %cst_13 = arith.constant 0.000000e+00 : f32
    %21 = vector.broadcast %cst_13 : f32 to vector<16x32xf32>
    %22 = arith.cmpf ogt, %20, %21 : vector<16x32xf32>
    %cst_14 = arith.constant 0.000000e+00 : f32
    %23 = vector.broadcast %cst_14 : f32 to vector<16x32xf32>
    %24 = arith.minimumf %20, %23 : vector<16x32xf32>
    %25 = math.exp %24 : vector<16x32xf32>
    %cst_15 = arith.constant 1.000000e+00 : f32
    %26 = vector.broadcast %cst_15 : f32 to vector<16x32xf32>
    %27 = arith.subf %25, %26 : vector<16x32xf32>
    %28 = arith.select %22, %20, %27 : vector<16x32xi1>, vector<16x32xf32>
    %29 = arith.truncf %28 : vector<16x32xf32> to vector<16x32xbf16>
    %c0_16 = arith.constant 0 : index
    %c0_17 = arith.constant 0 : index
    %30 = vector.load %arg6[%c0_16, %c0_17] : memref<32x4xbf16, #tpu.memory_space<vmem>>, vector<32x4xbf16>
    %cst_18 = arith.constant dense<0.000000e+00> : vector<16x4xf32>
    %31 = tpu.matmul %29, %30, %cst_18 {dimension_numbers = #tpu.dot_dimension_numbers<[1], [0], [0], [1], [0, 0, 1, 1], [], []>} : vector<16x32xbf16>, vector<32x4xbf16>, vector<16x4xf32> -> vector<16x4xf32>
    %c0_19 = arith.constant 0 : index
    %c0_20 = arith.constant 0 : index
    %32 = vector.load %arg7[%c0_19, %c0_20] : memref<1x4xf32, #tpu.memory_space<vmem>>, vector<1x4xf32>
    %33 = vector.broadcast %32 : vector<1x4xf32> to vector<16x4xf32>
    %34 = arith.addf %31, %33 : vector<16x4xf32>
    %c0_21 = arith.constant 0 : index
    %c0_22 = arith.constant 0 : index
    %35 = vector.load %arg8[%c0_21, %c0_22] : memref<16x4xf32, #tpu.memory_space<vmem>>, vector<16x4xf32>
    tpu.vector_store %arg8[%c0_21, %c0_22], %34 {strides = array<i32>} : memref<16x4xf32, #tpu.memory_space<vmem>>, vector<16x4xf32>,
    return
  }
  func.func @transform_0(%arg0: i32) -> (i32, i32) {
    %c0_i32 = arith.constant 0 : i32
    %c0_i32_0 = arith.constant 0 : i32
    return %arg0, %c0_i32 : i32, i32
  }
  func.func @transform_1(%arg0: i32) -> (i32, i32) {
    %c0_i32 = arith.constant 0 : i32
    %c0_i32_0 = arith.constant 0 : i32
    %c0_i32_1 = arith.constant 0 : i32
    return %c0_i32, %c0_i32_0 : i32, i32
  }
  func.func @transform_2(%arg0: i32) -> (i32, i32) {
    %c0_i32 = arith.constant 0 : i32
    %c0_i32_0 = arith.constant 0 : i32
    %c0_i32_1 = arith.constant 0 : i32
    return %c0_i32, %c0_i32_0 : i32, i32
  }
  func.func @transform_3(%arg0: i32) -> (i32, i32) {
    %c0_i32 = arith.constant 0 : i32
    %c0_i32_0 = arith.constant 0 : i32
    %c0_i32_1 = arith.constant 0 : i32
    return %c0_i32, %c0_i32_0 : i32, i32
  }
  func.func @transform_4(%arg0: i32) -> (i32, i32) {
    %c0_i32 = arith.constant 0 : i32
    %c0_i32_0 = arith.constant 0 : i32
    %c0_i32_1 = arith.constant 0 : i32
    return %c0_i32, %c0_i32_0 : i32, i32
  }
  func.func @transform_5(%arg0: i32) -> (i32, i32) {
    %c0_i32 = arith.constant 0 : i32
    %c0_i32_0 = arith.constant 0 : i32
    %c0_i32_1 = arith.constant 0 : i32
    return %c0_i32, %c0_i32_0 : i32, i32
  }
  func.func @transform_6(%arg0: i32) -> (i32, i32) {
    %c0_i32 = arith.constant 0 : i32
    %c0_i32_0 = arith.constant 0 : i32
    %c0_i32_1 = arith.constant 0 : i32
    return %c0_i32, %c0_i32_0 : i32, i32
  }
  func.func @transform_7(%arg0: i32) -> (i32, i32) {
    %c0_i32 = arith.constant 0 : i32
    %c0_i32_0 = arith.constant 0 : i32
    return %arg0, %c0_i32 : i32, i32
  }
}

</mosaic_0001>

<llo_original>
// kernel: qnet_forward.1
$region0: #{qnet_forward.1}
  #allocation0 [shape = 'u32[]', space=smem, size = 0x4, offset = 0x4, fixed_abs, tag = 'smem constant byte address 0x4 - core index']
  #allocation1 [shape = 'u32[72,128]{1,0:T(1,128)}', space=vmem, size = 0x9000, scoped, tag = 'internal scratch']
  %s0 = inlined_call_operand.vmem [shape: f32[16,16], index: 0, kind: input, shape index: {}]
  %s1 = inlined_call_operand.hbm [shape: bf16[16,32], index: 1, kind: input, shape index: {}]
  %s2 = inlined_call_operand.vmem [shape: f32[1,32], index: 2, kind: input, shape index: {}]
  %s3 = inlined_call_operand.hbm [shape: bf16[32,32], index: 3, kind: input, shape index: {}]
  %s4 = inlined_call_operand.vmem [shape: f32[1,32], index: 4, kind: input, shape index: {}]
  %s5 = inlined_call_operand.vmem [shape: bf16[32,4], index: 5, kind: input, shape index: {}]
  %s6 = inlined_call_operand.vmem [shape: f32[1,4], index: 6, kind: input, shape index: {}]
  %s7 = inlined_call_operand.vmem [shape: f32[16,4], index: 7, kind: output, shape index: {}]
  %s8 = sld [smem:[#allocation0]]
  $region46: #{qnet_forward.1} parent=0
    _
  %s10 = ssub.s32 1, %s8
  %s11 = scalar_select 0, %s10, %s8
  $region1: #{qnet_forward.1} parent=0
    #allocation2 [shape = 'u8[4096]{0}', space=vmem, size = 0x1000, scoped, tag = 'input window, operand 1, single buffered']
    #allocation3 [shape = 's32[1]{0}', space=sflag, size = 0x4, scoped, tag = 'scoped memory for qnet_forward.1']
    #allocation4 [shape = 'u8[8192]{0}', space=vmem, size = 0x2000, scoped, tag = 'input window, operand 3, single buffered']
    #allocation5 [shape = 's32[1]{0}', space=sflag, size = 0x4, scoped, tag = 'scoped memory for qnet_forward.1']
    %12 = vsyncpa [#allocation3], 0
    %13 = vsyncpa [#allocation5], 0
    // Predicated region
    $region2: #{qnet_forward.1} parent=1 // pred_check
      _
    $region3: #{qnet_forward.1} parent=1 // pred_check_branch
      %15 = sbr.rel (0) target = $region5
    $region4: #{qnet_forward.1} parent=1 // pred_region
      _
    $region5: #{qnet_forward.1} parent=1 // pred_fallthru
      _
    // Predicated region
    $region6: #{qnet_forward.1} parent=1 // pred_check
      _
    $region7: #{qnet_forward.1} parent=1 // pred_check_branch
      %17 = sbr.rel (0) target = $region9
    $region8: #{qnet_forward.1} parent=1 // pred_region
      %19 = vsyncadd [#allocation3], 0
      %s20 = sshll.u32 %s1, 4
      %s21 = int_to_ptr.hbm [resolvable:$true] %s20
      %s22 = sshll.u32 [#allocation2], 4
      %s23 = int_to_ptr.vmem [resolvable:$true] %s22
      %28 = dma.hbm_to_vmem [thread:$0]  %s21, 128, %s23, [#allocation3], 64, 64, 4
    $region9: #{qnet_forward.1} parent=1 // pred_fallthru
      _
    // Predicated region
    $region10: #{qnet_forward.1} parent=1 // pred_check
      _
    $region11: #{qnet_forward.1} parent=1 // pred_check_branch
      %30 = sbr.rel (0) target = $region13
    $region12: #{qnet_forward.1} parent=1 // pred_region
      _
    $region13: #{qnet_forward.1} parent=1 // pred_fallthru
      _
    // Predicated region
    $region14: #{qnet_forward.1} parent=1 // pred_check
      _
    $region15: #{qnet_forward.1} parent=1 // pred_check_branch
      %32 = sbr.rel (0) target = $region17
    $region16: #{qnet_forward.1} parent=1 // pred_region
      %34 = vsyncadd [#allocation5], 0
      %s35 = sshll.u32 %s3, 4
      %s36 = int_to_ptr.hbm [resolvable:$true] %s35
      %s37 = sshll.u32 [#allocation4], 4
      %s38 = int_to_ptr.vmem [resolvable:$true] %s37
      %43 = dma.hbm_to_vmem [thread:$0]  %s36, 256, %s38, [#allocation5], 64, 64, 4
    $region17: #{qnet_forward.1} parent=1 // pred_fallthru
      _
    // Predicated region
    $region18: #{qnet_forward.1} parent=1 // pred_check
      _
    $region19: #{qnet_forward.1} parent=1 // pred_check_branch
      %45 = sbr.rel (0) target = $region21
    $region20: #{qnet_forward.1} parent=1 // pred_region
      _
    $region21: #{qnet_forward.1} parent=1 // pred_fallthru
      _
    // Predicated region
    $region22: #{qnet_forward.1} parent=1 // pred_check
      _
    $region23: #{qnet_forward.1} parent=1 // pred_check_branch
      %47 = sbr.rel (0) target = $region25
    $region24: #{qnet_forward.1} parent=1 // pred_region
      _
    $region25: #{qnet_forward.1} parent=1 // pred_fallthru
      _
    // Predicated region
    $region26: #{qnet_forward.1} parent=1 // pred_check
      _
    $region27: #{qnet_forward.1} parent=1 // pred_check_branch
      %49 = sbr.rel (0) target = $region29
    $region28: #{qnet_forward.1} parent=1 // pred_region
      _
    $region29: #{qnet_forward.1} parent=1 // pred_fallthru
      _
    // Predicated region
    $region30: #{qnet_forward.1} parent=1 // pred_check
      _
    $region31: #{qnet_forward.1} parent=1 // pred_check_branch
      %51 = sbr.rel (0) target = $region33
    $region32: #{qnet_forward.1} parent=1 // pred_region
      %53 = dma.done [#allocation3], 128
    $region33: #{qnet_forward.1} parent=1 // pred_fallthru
      _
    // Predicated region
    $region34: #{qnet_forward.1} parent=1 // pred_check
      _
    $region35: #{qnet_forward.1} parent=1 // pred_check_branch
      %55 = sbr.rel (0) target = $region37
    $region36: #{qnet_forward.1} parent=1 // pred_region
      %57 = dma.done [#allocation5], 256
    $region37: #{qnet_forward.1} parent=1 // pred_fallthru
      _
    %v59 = vld [vmem:[%s0] sm:$0xff]
    %v60 = vld [vmem:[%s0 + $0x8] sm:$0xff]
    %v61 = vpack.c.bf16 %v60, %v59
    %v62 = vld [vmem:[#allocation2] sm:$0xf]
    %v63 = vld [vmem:[#allocation2 + $0x4] sm:$0xf]
    %v64 = vld [vmem:[%s2] sm:$0x1]
    %v66 = vperm.slane %v64, 0
    %v70 = vunpack.c.l.b16 %v62
    %v71 = vunpack.c.l.b16 %v63
    %v72 = vpack.c.b16 %v71, %v70
    %vm74 = vcmask 130048
    %v76 = vsel %vm74, %v61, 0
    %78 = vmatpush.bf16.msra.mxu0 0
    %79 = vmatpush.bf16.msra.mxu0 0
    %80 = vmatpush.bf16.msra.mxu0 0
    %81 = vmatpush.bf16.msra.mxu0 0
    %82 = vmatpush.bf16.msra.mxu0 0
    %83 = vmatpush.bf16.msra.mxu0 0
    %84 = vmatpush.bf16.msra.mxu0 0
    %85 = vmatpush.bf16.msra.mxu0 %v72
    %86 = vmatmul.bf16.gmra.mxu0 %v76
    %v87 = vpop.f32.mrf.mxu0
    %v88 = vadd.f32 %v66, %v87
    %v89 = vpop.f32.mrf.mxu0
    %v90 = vadd.f32 %v66, %v89
    %91 = vdwg.mxu0
    %vm92 = vcmp.gt.f32.partialorder %v88, 0.0
    %vm93 = vcmp.gt.f32.partialorder %v90, 0.0
    %v94 = vmin.f32 %v88, 0.0
    %v95 = vmin.f32 %v90, 0.0
    %v96 = vmul.f32 %v94, 1.442695
    %v97 = vpow.pop %v96
    %v98 = vmul.f32 %v95, 1.442695
    %v99 = vpow.pop %v98
    %v100 = vsub.f32 %v97, 1.0
    %v101 = vsub.f32 %v99, 1.0
    %v102 = vsel %vm92, %v88, %v100
    %v103 = vsel %vm93, %v90, %v101
    %v104 = vpack.c.bf16 %v103, %v102
    %v105 = vld [vmem:[#allocation4] sm:$0xf]
    %v106 = vld [vmem:[#allocation4 + $0x4] sm:$0xf]
    %v107 = vld [vmem:[#allocation4 + $0x8] sm:$0xf]
    %v108 = vld [vmem:[#allocation4 + $0xc] sm:$0xf]
    %v109 = vld [vmem:[%s4] sm:$0x1]
    %v111 = vperm.slane %v109, 0
    %v117 = vunpack.c.l.b16 %v105
    %v118 = vunpack.c.l.b16 %v106
    %v119 = vunpack.c.l.b16 %v107
    %v120 = vunpack.c.l.b16 %v108
    %v121 = vpack.c.b16 %v118, %v117
    %v122 = vpack.c.b16 %v120, %v119
    %vm125 = vcmask 261120
    %v127 = vsel %vm125, %v104, 0
    %129 = vmatpush.bf16.msra.mxu0 0
    %130 = vmatpush.bf16.msra.mxu0 0
    %131 = vmatpush.bf16.msra.mxu0 0
    %132 = vmatpush.bf16.msra.mxu0 0
    %133 = vmatpush.bf16.msra.mxu0 0
    %134 = vmatpush.bf16.msra.mxu0 0
    %135 = vmatpush.bf16.msra.mxu0 %v122
    %136 = vmatpush.bf16.msra.mxu0 %v121
    %137 = vmatmul.bf16.gmra.mxu0 %v127
    %v138 = vpop.f32.mrf.mxu0
    %v139 = vadd.f32 %v111, %v138
    %v140 = vpop.f32.mrf.mxu0
    %v141 = vadd.f32 %v111, %v140
    %142 = vdwg.mxu0
    %vm143 = vcmp.gt.f32.partialorder %v139, 0.0
    %vm144 = vcmp.gt.f32.partialorder %v141, 0.0
    %v145 = vmin.f32 %v139, 0.0
    %v146 = vmin.f32 %v141, 0.0
    %v147 = vmul.f32 %v145, 1.442695
    %v148 = vpow.pop %v147
    %v149 = vmul.f32 %v146, 1.442695
    %v150 = vpow.pop %v149
    %v151 = vsub.f32 %v148, 1.0
    %v152 = vsub.f32 %v150, 1.0
    %v153 = vsel %vm143, %v139, %v151
    %v154 = vsel %vm144, %v141, %v152
    %v155 = vpack.c.bf16 %v154, %v153
    %v156 = vld [vmem:[%s5] sm:$0xf]
    %v157 = vld [vmem:[%s5 + $0x4] sm:$0xf]
    %v158 = vld [vmem:[%s5 + $0x8] sm:$0xf]
    %v159 = vld [vmem:[%s5 + $0xc] sm:$0xf]
    %v160 = vld [vmem:[%s6] sm:$0x1]
    %v162 = vperm.slane %v160, 0
    %v168 = vunpack.c.l.b16 %v156
    %v169 = vunpack.c.l.b16 %v157
    %v170 = vunpack.c.l.b16 %v158
    %v171 = vunpack.c.l.b16 %v159
    %v172 = vpack.c.b16 %v169, %v168
    %v173 = vpack.c.b16 %v171, %v170
    %v177 = vsel %vm125, %v155, 0
    %179 = vmatpush.bf16.msra.mxu0 0
    %180 = vmatpush.bf16.msra.mxu0 0
    %181 = vmatpush.bf16.msra.mxu0 0
    %182 = vmatpush.bf16.msra.mxu0 0
    %183 = vmatpush.bf16.msra.mxu0 0
    %184 = vmatpush.bf16.msra.mxu0 0
    %185 = vmatpush.bf16.msra.mxu0 %v173
    %186 = vmatpush.bf16.msra.mxu0 %v172
    %187 = vmatmul.bf16.gmra.mxu0 %v177
    %v188 = vpop.f32.mrf.mxu0
    %v189 = vadd.f32 %v162, %v188
    %v190 = vpop.f32.mrf.mxu0
    %v191 = vadd.f32 %v162, %v190
    %192 = vdwg.mxu0
    %vm193 = vcmask 31744
    %194 = vst.msk [vmem:[%s7] sm:$0xff] %vm193, %v189
    %195 = vst.msk [vmem:[%s7 + $0x8] sm:$0xff] %vm193, %v191
    // Predicated region
    $region38: #{qnet_forward.1} parent=1 // pred_check
      _
    $region39: #{qnet_forward.1} parent=1 // pred_check_branch
      %197 = sbr.rel (0) target = $region41
    $region40: #{qnet_forward.1} parent=1 // pred_region
      _
    $region41: #{qnet_forward.1} parent=1 // pred_fallthru
      _
    // Predicated region
    $region42: #{qnet_forward.1} parent=1 // pred_check
      _
    $region43: #{qnet_forward.1} parent=1 // pred_check_branch
      %199 = sbr.rel (0) target = $region45
    $region44: #{qnet_forward.1} parent=1 // pred_region
      _
    $region45: #{qnet_forward.1} parent=1 // pred_fallthru
      _
    %200 = vsyncpa [#allocation3], 1
    %201 = vsyncpa [#allocation5], 1

</llo_original>
